<compile_context>
chip_gen: v5e
topology: v5e:2x2
jax: 0.10.0
libtpu: 0.0.40
codegen_flags: <defaults>
</compile_context>

<pallas_src>
import functools

import jax
import jax.numpy as jnp
from jax.experimental import pallas as pl
from jax.experimental.pallas import tpu as pltpu


def _round_up(x, m):
    return (x + m - 1) // m * m


# ----------------------------- Pallas kernels ------------------------------ #
def _matmul_bias_hardtanh_kernel(p_ref, w_ref, bias_ref, o_ref):
    """Weight-resident path: one (TM, Cout_pad) tile, full K in one shot."""
    y = jnp.dot(p_ref[...], w_ref[...], preferred_element_type=jnp.float32)
    y = y + bias_ref[...]                       # folded BN bias (f32)
    o_ref[...] = jnp.clip(y, 0.0, 20.0).astype(o_ref.dtype)


def _matmul_bias_hardtanh_ktiled_kernel(p_ref, w_ref, bias_ref, o_ref):
    """Fallback: K tiled; accumulate directly into the resident f32 output."""
    k = pl.program_id(2)

    @pl.when(k == 0)
    def _():
        o_ref[...] = jnp.zeros_like(o_ref)

    o_ref[...] += jnp.dot(p_ref[...], w_ref[...],
                          preferred_element_type=jnp.float32)

    @pl.when(k == pl.num_programs(2) - 1)
    def _():
        o_ref[...] = jnp.clip(o_ref[...] + bias_ref[...], 0.0, 20.0)


def _fused_matmul_bn_act(patches, wmat, bias, *, tm, tn, tk,
                         weight_resident, vmem_limit):
    m, k = patches.shape
    _, n = wmat.shape
    cost = pl.CostEstimate(
        flops=2 * m * k * n,
        transcendentals=0,
        bytes_accessed=(patches.size * patches.dtype.itemsize
                        + wmat.size * wmat.dtype.itemsize
                        + m * n * 4),
    )
    if weight_resident:
        grid = (m // tm,)
        grid_spec = pltpu.PrefetchScalarGridSpec(
            num_scalar_prefetch=0,
            grid=grid,
            in_specs=[
                pl.BlockSpec((tm, tk), lambda i: (i, 0)),   # patches: stream once
                pl.BlockSpec((tk, tn), lambda i: (0, 0)),   # weights: resident
                pl.BlockSpec((1, tn), lambda i: (0, 0)),    # bias: resident
            ],
            out_specs=pl.BlockSpec((tm, tn), lambda i: (i, 0)),
        )
        kernel = _matmul_bias_hardtanh_kernel
        dims = ("parallel",)                    # shards across v7x's 2 TCs
    else:
        grid = (m // tm, n // tn, k // tk)
        grid_spec = pltpu.PrefetchScalarGridSpec(
            num_scalar_prefetch=0,
            grid=grid,
            in_specs=[
                pl.BlockSpec((tm, tk), lambda i, j, kk: (i, kk)),
                pl.BlockSpec((tk, tn), lambda i, j, kk: (kk, j)),
                pl.BlockSpec((1, tn), lambda i, j, kk: (0, j)),
            ],
            out_specs=pl.BlockSpec((tm, tn), lambda i, j, kk: (i, j)),
        )
        kernel = _matmul_bias_hardtanh_ktiled_kernel
        dims = ("parallel", "parallel", "arbitrary")

    return pl.pallas_call(
        kernel,
        out_shape=jax.ShapeDtypeStruct((m, n), jnp.float32),
        grid_spec=grid_spec,
        compiler_params=pltpu.CompilerParams(
            dimension_semantics=dims, vmem_limit_bytes=vmem_limit),
        cost_estimate=cost,
    )(patches, wmat, bias)


# ------------------------------ JAX wrapper -------------------------------- #
def _im2col_nhwc_bf16(x_nhwc, kh, kw, stride, pad):
    """NHWC input -> bf16 patches (N*Ho*Wo, KH*KW*C), channels lane-innermost."""
    n, h, w, c = x_nhwc.shape
    x = x_nhwc.astype(jnp.bfloat16)                 # build patches in bf16
    xp = jnp.pad(x, ((0, 0), (pad, pad), (pad, pad), (0, 0)))
    ho = (h + 2 * pad - kh) // stride + 1
    wo = (w + 2 * pad - kw) // stride + 1
    cols = [xp[:, ki:ki + stride * ho:stride, kj:kj + stride * wo:stride, :]
            for ki in range(kh) for kj in range(kw)]    # each (N,Ho,Wo,C)
    patches = jnp.stack(cols, axis=3).reshape(n * ho * wo, kh * kw * c)
    return patches, (n, ho, wo)


def basic_conv2d_forward_nhwc(x_nhwc, params, *, kernel_size, stride=1,
                              padding=0, eps=1e-3):
    """NHWC-in / NHWC-out BasicConv2d.  Use this across a full GoogLeNet stack
    to avoid per-layer NCHW<->NHWC transposes."""
    kh = kw = kernel_size
    conv_w = params["conv_w"]                       # (Cout, Cin, KH, KW)
    cout = conv_w.shape[0]

    # Fold BatchNorm (inference) into per-output-channel scale/bias in f32.
    inv_std = jax.lax.rsqrt(params["bn_var"].astype(jnp.float32) + eps)
    scale = params["bn_gamma"] * inv_std            # (Cout,)
    bias = params["bn_beta"] - params["bn_mean"] * scale

    # TODO(synk): move the (ki,kj) gather into the kernel (manual DMA of input
    # row slabs) to eliminate the KH*KW im2col expansion in HBM entirely.
    patches, (n, ho, wo) = _im2col_nhwc_bf16(x_nhwc, kh, kw, stride, padding)
    m, kdim = patches.shape

    # Weight (Cout,Cin,KH,KW) -> (KH,KW,Cin,Cout) -> (KH*KW*Cin, Cout); column
    # order matches patch layout (ki,kj,c).  Fold BN scale (f32), cast to bf16.
    wmat = jnp.transpose(conv_w, (2, 3, 1, 0)).reshape(kdim, cout)
    wmat = (wmat.astype(jnp.float32) * scale[None, :]).astype(jnp.bfloat16)

    # --------- pad to TPU-friendly shapes & pick tiles --------------------- #
    cout_pad = _round_up(cout, 128)
    k_pad = _round_up(kdim, 128)
    m_pad = _round_up(m, 16)                        # bf16 sublane tile = (16,128)

    weight_bytes = k_pad * cout_pad * 2             # bf16
    weight_resident = weight_bytes <= 8 * 1024 * 1024   # every GoogLeNet layer

    if weight_resident:
        tn, tk = cout_pad, k_pad
        # Large M tiles, but keep >=2 blocks along M when M allows so the
        # 'parallel' grid axis shards across v7x's two TensorCores.
        tm = 1024
        while tm > 16 and tm > max(16, m_pad // 2):
            tm //= 2

        def vmem_need(tm_):
            return (2 * tm_ * tk * 2 + 2 * weight_bytes
                    + 2 * tm_ * tn * 4 + 2 * tn * 4)

        while tm > 16 and vmem_need(tm) > 24 * 1024 * 1024:
            tm //= 2
    else:
        tn = 256 if cout_pad % 256 == 0 else 128
        tk = 512 if k_pad % 512 == 0 else (256 if k_pad % 256 == 0 else 128)
        tm = 512

        def vmem_need(tm_):
            return (2 * tm_ * tk * 2 + 2 * tk * tn * 2
                    + 2 * tm_ * tn * 4 + 2 * tn * 4)

    m_pad = _round_up(m_pad, tm)
    vmem_limit = int(min(56 * 1024 * 1024,
                         max(32 * 1024 * 1024, vmem_need(tm) + 4 * 1024 * 1024)))

    patches_p = jnp.pad(patches, ((0, m_pad - m), (0, k_pad - kdim)))      # bf16
    wmat_p = jnp.pad(wmat, ((0, k_pad - kdim), (0, cout_pad - cout)))      # bf16
    bias_p = jnp.pad(bias, (0, cout_pad - cout)).reshape(1, cout_pad)
    bias_p = bias_p.astype(jnp.float32)

    out2d = _fused_matmul_bn_act(
        patches_p, wmat_p, bias_p, tm=tm, tn=tn, tk=tk,
        weight_resident=weight_resident, vmem_limit=vmem_limit,
    )                                               # (M_pad, Cout_pad) f32

    return out2d[:m, :cout].reshape(n, ho, wo, cout)


def basic_conv2d_forward(x, params, *, kernel_size, stride=1, padding=0,
                         eps=1e-3):
    """PyTorch-compatible NCHW wrapper: Conv2d(bias=False)+BN(eval)+Hardtanh(0,20).

    x: (N, C_in, H, W) float32.  Returns (N, C_out, H_out, W_out) float32.
    For a full model, prefer basic_conv2d_forward_nhwc and convert layouts once
    at the model boundaries.
    """
    x_nhwc = jnp.transpose(x, (0, 2, 3, 1))
    out_nhwc = basic_conv2d_forward_nhwc(
        x_nhwc, params, kernel_size=kernel_size, stride=stride,
        padding=padding, eps=eps)
    return jnp.transpose(out_nhwc, (0, 3, 1, 2))


# ------------------------------ reference ---------------------------------- #
def _reference(x, params, *, kernel_size, stride, padding, eps=1e-3):
    conv = jax.lax.conv_general_dilated(
        x, params["conv_w"], (stride, stride),
        [(padding, padding), (padding, padding)],
        dimension_numbers=("NCHW", "OIHW", "NCHW"))
    inv_std = jax.lax.rsqrt(params["bn_var"] + eps)
    scale = params["bn_gamma"] * inv_std
    bias = params["bn_beta"] - params["bn_mean"] * scale
    y = conv * scale[None, :, None, None] + bias[None, :, None, None]
    return jnp.clip(y, 0.0, 20.0)


def init_params(key, in_channels, out_channels, kernel_size):
    k_w, k_g, k_b, k_m, k_v = jax.random.split(key, 5)
    conv_w = jax.random.normal(
        k_w, (out_channels, in_channels, kernel_size, kernel_size),
        dtype=jnp.float32) * 0.1
    return {
        "conv_w": conv_w,
        "bn_gamma": 1.0 + 0.1 * jax.random.normal(k_g, (out_channels,), jnp.float32),
        "bn_beta": 0.1 * jax.random.normal(k_b, (out_channels,), jnp.float32),
        "bn_mean": 0.1 * jax.random.normal(k_m, (out_channels,), jnp.float32),
        "bn_var": jnp.abs(jax.random.normal(k_v, (out_channels,), jnp.float32)) + 0.5,
    }


if __name__ == "__main__":
    key = jax.random.PRNGKey(0)
    k_x, k_p = jax.random.split(key)

    # Small shapes: N=2, C_in=4, H=W=16; Conv2d(4 -> 8, kernel_size=3, padding=1).
    N, C_IN, H, W = 2, 4, 16, 16
    C_OUT, KSIZE, PAD = 8, 3, 1

    x = jax.random.normal(k_x, (N, C_IN, H, W), dtype=jnp.float32)
    params = init_params(k_p, C_IN, C_OUT, KSIZE)

    fwd = jax.jit(functools.partial(
        basic_conv2d_forward, kernel_size=KSIZE, stride=1, padding=PAD))
    out = fwd(x, params)
    jax.block_until_ready(out)

    ref = _reference(x, params, kernel_size=KSIZE, stride=1, padding=PAD)

    assert out.shape == (N, C_OUT, H, W), out.shape
    assert bool(jnp.all(out >= 0.0)) and bool(jnp.all(out <= 20.0))
    # bf16 MXU operands -> allow bf16-level tolerance vs the f32 reference.
    max_err = float(jnp.max(jnp.abs(out - ref)))
    assert max_err < 0.15, f"max abs error {max_err}"
    print("KERNEL_OK")
</pallas_src>

<mosaic_0001>
module attributes {stable_mosaic.version = 11 : i64} {
  func.func @_matmul_bias_hardtanh_kernel(%arg0: i32, %arg1: memref<256x128xbf16, #tpu.memory_space<vmem>>, %arg2: memref<128x128xbf16, #tpu.memory_space<vmem>>, %arg3: memref<1x128xf32, #tpu.memory_space<vmem>>, %arg4: memref<256x128xf32, #tpu.memory_space<vmem>>) attributes {dimension_semantics = [#tpu.dimension_semantics<parallel>], iteration_bounds = array<i64: 2>, scalar_prefetch = 0 : i64, scratch_operands = 0 : i64, tpu.core_type = #tpu.core_type<tc>, window_params = [{transform_indices = @transform_0, window_bounds = array<i64: 256, 128>}, {pipeline_mode = #tpu.pipeline_mode<synchronous>, transform_indices = @transform_1, window_bounds = array<i64: 128, 128>}, {pipeline_mode = #tpu.pipeline_mode<synchronous>, transform_indices = @transform_2, window_bounds = array<i64: 1, 128>}, {transform_indices = @transform_3, window_bounds = array<i64: 256, 128>}]} {
    %c0 = arith.constant 0 : index
    %c0_0 = arith.constant 0 : index
    %0 = vector.load %arg1[%c0, %c0_0] : memref<256x128xbf16, #tpu.memory_space<vmem>>, vector<256x128xbf16>
    %c0_1 = arith.constant 0 : index
    %c0_2 = arith.constant 0 : index
    %1 = vector.load %arg2[%c0_1, %c0_2] : memref<128x128xbf16, #tpu.memory_space<vmem>>, vector<128x128xbf16>
    %cst = arith.constant dense<0.000000e+00> : vector<256x128xf32>
    %2 = tpu.matmul %0, %1, %cst {dimension_numbers = #tpu.dot_dimension_numbers<[1], [0], [0], [1], [0, 0, 1, 1], [], []>} : vector<256x128xbf16>, vector<128x128xbf16>, vector<256x128xf32> -> vector<256x128xf32>
    %c0_3 = arith.constant 0 : index
    %c0_4 = arith.constant 0 : index
    %3 = vector.load %arg3[%c0_3, %c0_4] : memref<1x128xf32, #tpu.memory_space<vmem>>, vector<1x128xf32>
    %4 = vector.broadcast %3 : vector<1x128xf32> to vector<256x128xf32>
    %5 = arith.addf %2, %4 : vector<256x128xf32>
    %cst_5 = arith.constant 0.000000e+00 : f32
    %cst_6 = arith.constant 2.000000e+01 : f32
    %6 = vector.broadcast %cst_5 : f32 to vector<256x128xf32>
    %7 = arith.maximumf %6, %5 : vector<256x128xf32>
    %8 = vector.broadcast %cst_6 : f32 to vector<256x128xf32>
    %9 = arith.minimumf %8, %7 : vector<256x128xf32>
    %c0_7 = arith.constant 0 : index
    %c0_8 = arith.constant 0 : index
    %10 = vector.load %arg4[%c0_7, %c0_8] : memref<256x128xf32, #tpu.memory_space<vmem>>, vector<256x128xf32>
    tpu.vector_store %arg4[%c0_7, %c0_8], %9 {strides = array<i32>} : memref<256x128xf32, #tpu.memory_space<vmem>>, vector<256x128xf32>,
    return
  }
  func.func @transform_0(%arg0: i32) -> (i32, i32) {
    %c0_i32 = arith.constant 0 : i32
    %c0_i32_0 = arith.constant 0 : i32
    return %arg0, %c0_i32 : i32, i32
  }
  func.func @transform_1(%arg0: i32) -> (i32, i32) {
    %c0_i32 = arith.constant 0 : i32
    %c0_i32_0 = arith.constant 0 : i32
    %c0_i32_1 = arith.constant 0 : i32
    return %c0_i32, %c0_i32_0 : i32, i32
  }
  func.func @transform_2(%arg0: i32) -> (i32, i32) {
    %c0_i32 = arith.constant 0 : i32
    %c0_i32_0 = arith.constant 0 : i32
    %c0_i32_1 = arith.constant 0 : i32
    return %c0_i32, %c0_i32_0 : i32, i32
  }
  func.func @transform_3(%arg0: i32) -> (i32, i32) {
    %c0_i32 = arith.constant 0 : i32
    %c0_i32_0 = arith.constant 0 : i32
    return %arg0, %c0_i32 : i32, i32
  }
}

</mosaic_0001>

<llo_original>
// kernel: basic_conv2d_forward.1
$region0: #{basic_conv2d_forward.1}
  #allocation0 [shape = 'u32[]', space=smem, size = 0x4, offset = 0x4, fixed_abs, tag = 'smem constant byte address 0x4 - core index']
  #allocation1 [shape = 'u32[72,128]{1,0:T(1,128)}', space=vmem, size = 0x9000, scoped, tag = 'internal scratch']
  %s0 = inlined_call_operand.vmem [shape: bf16[512,128], index: 0, kind: input, shape index: {}]
  %s1 = inlined_call_operand.vmem [shape: bf16[128,128], index: 1, kind: input, shape index: {}]
  %s2 = inlined_call_operand.vmem [shape: f32[1,128], index: 2, kind: input, shape index: {}]
  %s3 = inlined_call_operand.vmem [shape: f32[512,128], index: 3, kind: output, shape index: {}]
  %s4 = sld [smem:[#allocation0]]
  $region45: #{basic_conv2d_forward.1} parent=0
    _
  %s6 = ssub.s32 1, %s4
  %s7 = scalar_select 0, %s6, %s4
  loop: start=0, step=1, limit=4
  $region2: #{basic_conv2d_forward.1} parent=0 // loop_pre_header
    _
  $region3: #{basic_conv2d_forward.1} parent=0 // loop_header
    %s9 = sphi 0, %s13
    %p10 = scmp.ge.s32.totalorder %s9, 4
    %s19 = sphi 0, %s21
    %s22 = sphi 0, %s19
    %s23 = sphi 0, %s22
    %s39 = sphi 0, %s23
    %s43 = sphi 0, %s43
    %s45 = sphi 0, %s43
    %s46 = sphi 0, %s45
    %s60 = sphi 0, %s46
    %s64 = sphi 0, %s64
    %s66 = sphi 0, %s64
    %s67 = sphi 0, %s66
    %s81 = sphi 0, %s67
    %s87 = sphi 0, %s89
    %s90 = sphi 0, %s87
    %s91 = sphi 0, %s90
    %s107 = sphi 0, %s91
  $region4: #{basic_conv2d_forward.1} parent=0 // loop_header_branch
    %12 = sbr.rel (%p10) target = $region8
  $region5: #{basic_conv2d_forward.1} parent=0 // loop_body
    %s14 = ssub.s32 %s9, 1
    %s15 = ssub.s32 %s9, 2
    %s16 = sadd.s32 %s9, 1
    %s17 = ssub.s32 %s9, %s16
    %p18 = scmp.eq.s32.totalorder %s17, 0
    %s20 = sadd.s32 %s19, 1
    %s21 = scalar_select %p18, %s19, %s20
    %p24 = pneg %p18
    %p25 = scmp.eq.s32.totalorder %s9, 1
    %p26 = por %p24, %p25
    %p27 = scmp.ne.s32.totalorder %s19, %s22
    %p28 = scmp.eq.s32.totalorder %s9, 0
    %p29 = por %p27, %p28
    %p30 = scmp.ne.s32.totalorder %s19, %s22
    %p31 = scmp.eq.s32.totalorder %s14, 1
    %p32 = por %p30, %p31
    %p33 = scmp.ne.s32.totalorder %s22, %s23
    %p34 = scmp.eq.s32.totalorder %s14, 0
    %p35 = por %p33, %p34
    %p36 = scmp.ne.s32.totalorder %s22, %s23
    %p37 = scmp.eq.s32.totalorder %s15, 1
    %p38 = por %p36, %p37
    %p40 = scmp.ne.s32.totalorder %s23, %s39
    %p41 = scmp.eq.s32.totalorder %s15, 0
    %p42 = por %p40, %p41
    %s44 = sadd.s32 %s43, 1
    %p47 = scmp.eq.s32.totalorder %s9, 1
    %p48 = scmp.ne.s32.totalorder %s43, %s45
    %p49 = scmp.eq.s32.totalorder %s9, 0
    %p50 = por %p48, %p49
    %p51 = scmp.ne.s32.totalorder %s43, %s45
    %p52 = scmp.eq.s32.totalorder %s14, 1
    %p53 = por %p51, %p52
    %p54 = scmp.ne.s32.totalorder %s45, %s46
    %p55 = scmp.eq.s32.totalorder %s14, 0
    %p56 = por %p54, %p55
    %p57 = scmp.ne.s32.totalorder %s45, %s46
    %p58 = scmp.eq.s32.totalorder %s15, 1
    %p59 = por %p57, %p58
    %p61 = scmp.ne.s32.totalorder %s46, %s60
    %p62 = scmp.eq.s32.totalorder %s15, 0
    %p63 = por %p61, %p62
    %s65 = sadd.s32 %s64, 1
    %p68 = scmp.eq.s32.totalorder %s9, 1
    %p69 = scmp.ne.s32.totalorder %s64, %s66
    %p70 = scmp.eq.s32.totalorder %s9, 0
    %p71 = por %p69, %p70
    %p72 = scmp.ne.s32.totalorder %s64, %s66
    %p73 = scmp.eq.s32.totalorder %s14, 1
    %p74 = por %p72, %p73
    %p75 = scmp.ne.s32.totalorder %s66, %s67
    %p76 = scmp.eq.s32.totalorder %s14, 0
    %p77 = por %p75, %p76
    %p78 = scmp.ne.s32.totalorder %s66, %s67
    %p79 = scmp.eq.s32.totalorder %s15, 1
    %p80 = por %p78, %p79
    %p82 = scmp.ne.s32.totalorder %s67, %s81
    %p83 = scmp.eq.s32.totalorder %s15, 0
    %p84 = por %p82, %p83
    %s85 = ssub.s32 %s9, %s16
    %p86 = scmp.eq.s32.totalorder %s85, 0
    %s88 = sadd.s32 %s87, 1
    %s89 = scalar_select %p86, %s87, %s88
    %p92 = pneg %p86
    %p93 = scmp.eq.s32.totalorder %s9, 1
    %p94 = por %p92, %p93
    %p95 = scmp.ne.s32.totalorder %s87, %s90
    %p96 = scmp.eq.s32.totalorder %s9, 0
    %p97 = por %p95, %p96
    %p98 = scmp.ne.s32.totalorder %s87, %s90
    %p99 = scmp.eq.s32.totalorder %s14, 1
    %p100 = por %p98, %p99
    %p101 = scmp.ne.s32.totalorder %s90, %s91
    %p102 = scmp.eq.s32.totalorder %s14, 0
    %p103 = por %p101, %p102
    %p104 = scmp.ne.s32.totalorder %s90, %s91
    %p105 = scmp.eq.s32.totalorder %s15, 1
    %p106 = por %p104, %p105
    %p108 = scmp.ne.s32.totalorder %s91, %s107
    %p109 = scmp.eq.s32.totalorder %s15, 0
    %p110 = por %p108, %p109
    %p111 = scmp.le.s32.totalorder 1, %s9
    %p112 = scmp.lt.s32.totalorder %s9, 3
    %p113 = pnand %p111, %p112
    %p114 = pneg %p113
    // Predicated region
    $region9: #{basic_conv2d_forward.1} parent=5 // pred_check
      _
    $region10: #{basic_conv2d_forward.1} parent=5 // pred_check_branch
      %116 = sbr.rel (%p113) target = $region12
    $region11: #{basic_conv2d_forward.1} parent=5 // pred_region
      %s117 = ssub.s32 %s9, 1
      // Predicated region
      $region13: #{basic_conv2d_forward.1} parent=11 // pred_check
        %p118 = pneg %p56
      $region14: #{basic_conv2d_forward.1} parent=11 // pred_check_branch
        %120 = sbr.rel (%p118) target = $region16
      $region15: #{basic_conv2d_forward.1} parent=11 // pred_region
        _
      $region16: #{basic_conv2d_forward.1} parent=11 // pred_fallthru
        _
      // Predicated region
      $region17: #{basic_conv2d_forward.1} parent=11 // pred_check
        %p121 = pneg %p77
      $region18: #{basic_conv2d_forward.1} parent=11 // pred_check_branch
        %123 = sbr.rel (%p121) target = $region20
      $region19: #{basic_conv2d_forward.1} parent=11 // pred_region
        _
      $region20: #{basic_conv2d_forward.1} parent=11 // pred_fallthru
        _
    $region12: #{basic_conv2d_forward.1} parent=5 // pred_fallthru
      _
    %p124 = scmp.lt.s32.totalorder %s9, 2
    // Predicated region
    $region21: #{basic_conv2d_forward.1} parent=5 // pred_check
      %p125 = pneg %p124
    $region22: #{basic_conv2d_forward.1} parent=5 // pred_check_branch
      %127 = sbr.rel (%p125) target = $region24
    $region23: #{basic_conv2d_forward.1} parent=5 // pred_region
      // Predicated region
      $region25: #{basic_conv2d_forward.1} parent=23 // pred_check
        %p128 = pneg %p29
      $region26: #{basic_conv2d_forward.1} parent=23 // pred_check_branch
        %130 = sbr.rel (%p128) target = $region28
      $region27: #{basic_conv2d_forward.1} parent=23 // pred_region
        %s131 = smul.u32 32, %s9
        %p132 = scmp.lt.s32.totalorder %s131, 63
        %s133 = scalar_select %p132, %s131, 63
        %s134 = smul.addr %s133, 4
        %s135 = scalar_lea.vmem %s0, %s134
        %s136 = smul.u32 32, %s9
      $region28: #{basic_conv2d_forward.1} parent=23 // pred_fallthru
        _
    $region24: #{basic_conv2d_forward.1} parent=5 // pred_fallthru
      _
    %p137 = scmp.le.s32.totalorder 1, %s9
    %p138 = scmp.lt.s32.totalorder %s9, 3
    %p139 = pnand %p137, %p138
    %p140 = pneg %p139
    // Predicated region
    $region29: #{basic_conv2d_forward.1} parent=5 // pred_check
      _
    $region30: #{basic_conv2d_forward.1} parent=5 // pred_check_branch
      %142 = sbr.rel (%p139) target = $region32
    $region31: #{basic_conv2d_forward.1} parent=5 // pred_region
      %s143 = ssub.s32 %s9, 1
      %s144 = smul.u32 32, %s14
      %p145 = scmp.lt.s32.totalorder %s144, 63
      %s146 = scalar_select %p145, %s144, 63
      %s147 = smul.addr %s146, 4
      %s148 = scalar_lea.vmem %s0, %s147
      %p149 = pneg %p35
      %p150 = pneg %p32
      %p151 = pneg %p56
      %p152 = pneg %p53
      %p153 = pneg %p77
      %p154 = pneg %p74
      %p155 = pneg %p103
      %p156 = pneg %p100
      %s157 = smul.u32 32, %s14
      %p158 = scmp.lt.s32.totalorder %s157, 63
      %s159 = scalar_select %p158, %s157, 63
      %s160 = smul.addr %s159, 8
      %s161 = scalar_lea.vmem %s3, %s160
      %s162 = smul.u32 32, %s14
      %p163 = scmp.lt.s32.totalorder %s162, 63
      %s164 = scalar_select %p163, %s162, 63
      %s165 = smul.addr %s164, 4
      %s166 = scalar_lea.vmem %s0, %s165
      %s167 = smul.u32 32, %s14
      %s168 = smul.u32 32, %s14
      %p169 = scmp.lt.s32.totalorder %s168, 63
      %s170 = scalar_select %p169, %s168, 63
      %s171 = smul.addr %s170, 8
      %s172 = scalar_lea.vmem %s3, %s171
      %s173 = smul.u32 32, %s14
      %v174 = vld [vmem:[%s166] sm:$0xf]
      %v175 = vld [vmem:[%s166 + $0x4] sm:$0xf]
      %v176 = vld [vmem:[%s166 + $0x8] sm:$0xf]
      %v177 = vld [vmem:[%s166 + $0xc] sm:$0xf]
      %v178 = vld [vmem:[%s166 + $0x10] sm:$0xf]
      %v179 = vld [vmem:[%s166 + $0x14] sm:$0xf]
      %v180 = vld [vmem:[%s166 + $0x18] sm:$0xf]
      %v181 = vld [vmem:[%s166 + $0x1c] sm:$0xf]
      %v182 = vld [vmem:[%s166 + $0x20] sm:$0xf]
      %v183 = vld [vmem:[%s166 + $0x24] sm:$0xf]
      %v184 = vld [vmem:[%s166 + $0x28] sm:$0xf]
      %v185 = vld [vmem:[%s166 + $0x2c] sm:$0xf]
      %v186 = vld [vmem:[%s166 + $0x30] sm:$0xf]
      %v187 = vld [vmem:[%s166 + $0x34] sm:$0xf]
      %v188 = vld [vmem:[%s166 + $0x38] sm:$0xf]
      %v189 = vld [vmem:[%s166 + $0x3c] sm:$0xf]
      %v190 = vld [vmem:[%s166 + $0x40] sm:$0xf]
      %v191 = vld [vmem:[%s166 + $0x44] sm:$0xf]
      %v192 = vld [vmem:[%s166 + $0x48] sm:$0xf]
      %v193 = vld [vmem:[%s166 + $0x4c] sm:$0xf]
      %v194 = vld [vmem:[%s166 + $0x50] sm:$0xf]
      %v195 = vld [vmem:[%s166 + $0x54] sm:$0xf]
      %v196 = vld [vmem:[%s166 + $0x58] sm:$0xf]
      %v197 = vld [vmem:[%s166 + $0x5c] sm:$0xf]
      %v198 = vld [vmem:[%s166 + $0x60] sm:$0xf]
      %v199 = vld [vmem:[%s166 + $0x64] sm:$0xf]
      %v200 = vld [vmem:[%s166 + $0x68] sm:$0xf]
      %v201 = vld [vmem:[%s166 + $0x6c] sm:$0xf]
      %v202 = vld [vmem:[%s166 + $0x70] sm:$0xf]
      %v203 = vld [vmem:[%s166 + $0x74] sm:$0xf]
      %v204 = vld [vmem:[%s166 + $0x78] sm:$0xf]
      %v205 = vld [vmem:[%s166 + $0x7c] sm:$0xf]
      %v206 = vld [vmem:[%s1] sm:$0xf]
      %v207 = vld [vmem:[%s1 + $0x4] sm:$0xf]
      %v208 = vld [vmem:[%s1 + $0x8] sm:$0xf]
      %v209 = vld [vmem:[%s1 + $0xc] sm:$0xf]
      %v210 = vld [vmem:[%s1 + $0x10] sm:$0xf]
      %v211 = vld [vmem:[%s1 + $0x14] sm:$0xf]
      %v212 = vld [vmem:[%s1 + $0x18] sm:$0xf]
      %v213 = vld [vmem:[%s1 + $0x1c] sm:$0xf]
      %v214 = vld [vmem:[%s1 + $0x20] sm:$0xf]
      %v215 = vld [vmem:[%s1 + $0x24] sm:$0xf]
      %v216 = vld [vmem:[%s1 + $0x28] sm:$0xf]
      %v217 = vld [vmem:[%s1 + $0x2c] sm:$0xf]
      %v218 = vld [vmem:[%s1 + $0x30] sm:$0xf]
      %v219 = vld [vmem:[%s1 + $0x34] sm:$0xf]
      %v220 = vld [vmem:[%s1 + $0x38] sm:$0xf]
      %v221 = vld [vmem:[%s1 + $0x3c] sm:$0xf]
      %v222 = vld [vmem:[%s2] sm:$0x1]
      %v224 = vperm.slane %v222, 0
      %v258 = vunpack.c.l.b16 %v174
      %v259 = vunpack.c.l.b16 %v175
      %v260 = vunpack.c.l.b16 %v176
      %v261 = vunpack.c.l.b16 %v177
      %v262 = vunpack.c.l.b16 %v178
      %v263 = vunpack.c.l.b16 %v179
      %v264 = vunpack.c.l.b16 %v180
      %v265 = vunpack.c.l.b16 %v181
      %v266 = vunpack.c.l.b16 %v182
      %v267 = vunpack.c.l.b16 %v183
      %v268 = vunpack.c.l.b16 %v184
      %v269 = vunpack.c.l.b16 %v185
      %v270 = vunpack.c.l.b16 %v186
      %v271 = vunpack.c.l.b16 %v187
      %v272 = vunpack.c.l.b16 %v188
      %v273 = vunpack.c.l.b16 %v189
      %v274 = vunpack.c.l.b16 %v190
      %v275 = vunpack.c.l.b16 %v191
      %v276 = vunpack.c.l.b16 %v192
      %v277 = vunpack.c.l.b16 %v193
      %v278 = vunpack.c.l.b16 %v194
      %v279 = vunpack.c.l.b16 %v195
      %v280 = vunpack.c.l.b16 %v196
      %v281 = vunpack.c.l.b16 %v197
      %v282 = vunpack.c.l.b16 %v198
      %v283 = vunpack.c.l.b16 %v199
      %v284 = vunpack.c.l.b16 %v200
      %v285 = vunpack.c.l.b16 %v201
      %v286 = vunpack.c.l.b16 %v202
      %v287 = vunpack.c.l.b16 %v203
      %v288 = vunpack.c.l.b16 %v204
      %v289 = vunpack.c.l.b16 %v205
      %v290 = vpack.c.b16 %v259, %v258
      %v291 = vpack.c.b16 %v261, %v260
      %v292 = vpack.c.b16 %v263, %v262
      %v293 = vpack.c.b16 %v265, %v264
      %v294 = vpack.c.b16 %v267, %v266
      %v295 = vpack.c.b16 %v269, %v268
      %v296 = vpack.c.b16 %v271, %v270
      %v297 = vpack.c.b16 %v273, %v272
      %v298 = vpack.c.b16 %v275, %v274
      %v299 = vpack.c.b16 %v277, %v276
      %v300 = vpack.c.b16 %v279, %v278
      %v301 = vpack.c.b16 %v281, %v280
      %v302 = vpack.c.b16 %v283, %v282
      %v303 = vpack.c.b16 %v285, %v284
      %v304 = vpack.c.b16 %v287, %v286
      %v305 = vpack.c.b16 %v289, %v288
      %v338 = vunpack.c.l.b16 %v206
      %v339 = vunpack.c.l.b16 %v207
      %v340 = vunpack.c.l.b16 %v208
      %v341 = vunpack.c.l.b16 %v209
      %v342 = vunpack.c.l.b16 %v210
      %v343 = vunpack.c.l.b16 %v211
      %v344 = vunpack.c.l.b16 %v212
      %v345 = vunpack.c.l.b16 %v213
      %v346 = vunpack.c.l.b16 %v214
      %v347 = vunpack.c.l.b16 %v215
      %v348 = vunpack.c.l.b16 %v216
      %v349 = vunpack.c.l.b16 %v217
      %v350 = vunpack.c.l.b16 %v218
      %v351 = vunpack.c.l.b16 %v219
      %v352 = vunpack.c.l.b16 %v220
      %v353 = vunpack.c.l.b16 %v221
      %v354 = vpack.c.b16 %v339, %v338
      %v355 = vpack.c.b16 %v341, %v340
      %v356 = vpack.c.b16 %v343, %v342
      %v357 = vpack.c.b16 %v345, %v344
      %v358 = vpack.c.b16 %v347, %v346
      %v359 = vpack.c.b16 %v349, %v348
      %v360 = vpack.c.b16 %v351, %v350
      %v361 = vpack.c.b16 %v353, %v352
      %370 = vmatpush.bf16.msra.mxu0 %v361
      %371 = vmatpush.bf16.msra.mxu0 %v360
      %372 = vmatpush.bf16.msra.mxu0 %v359
      %373 = vmatpush.bf16.msra.mxu0 %v358
      %374 = vmatpush.bf16.msra.mxu0 %v357
      %375 = vmatpush.bf16.msra.mxu0 %v356
      %376 = vmatpush.bf16.msra.mxu0 %v355
      %377 = vmatpush.bf16.msra.mxu0 %v354
      %378 = vmatmul.bf16.gmra.mxu0 %v290
      %v379 = vpop.f32.mrf.mxu0
      %v380 = vadd.f32 %v224, %v379
      %v381 = vpop.f32.mrf.mxu0
      %v382 = vadd.f32 %v224, %v381
      %383 = vmatmul.bf16.gmra.mxu0 %v291
      %v384 = vpop.f32.mrf.mxu0
      %v385 = vadd.f32 %v224, %v384
      %v386 = vpop.f32.mrf.mxu0
      %v387 = vadd.f32 %v224, %v386
      %388 = vmatmul.bf16.gmra.mxu0 %v292
      %v389 = vpop.f32.mrf.mxu0
      %v390 = vadd.f32 %v224, %v389
      %v391 = vpop.f32.mrf.mxu0
      %v392 = vadd.f32 %v224, %v391
      %393 = vmatmul.bf16.gmra.mxu0 %v293
      %v394 = vpop.f32.mrf.mxu0
      %v395 = vadd.f32 %v224, %v394
      %v396 = vpop.f32.mrf.mxu0
      %v397 = vadd.f32 %v224, %v396
      %398 = vmatmul.bf16.gmra.mxu0 %v294
      %v399 = vpop.f32.mrf.mxu0
      %v400 = vadd.f32 %v224, %v399
      %v401 = vpop.f32.mrf.mxu0
      %v402 = vadd.f32 %v224, %v401
      %403 = vmatmul.bf16.gmra.mxu0 %v295
      %v404 = vpop.f32.mrf.mxu0
      %v405 = vadd.f32 %v224, %v404
      %v406 = vpop.f32.mrf.mxu0
      %v407 = vadd.f32 %v224, %v406
      %408 = vmatmul.bf16.gmra.mxu0 %v296
      %v409 = vpop.f32.mrf.mxu0
      %v410 = vadd.f32 %v224, %v409
      %v411 = vpop.f32.mrf.mxu0
      %v412 = vadd.f32 %v224, %v411
      %413 = vmatmul.bf16.gmra.mxu0 %v297
      %v414 = vpop.f32.mrf.mxu0
      %v415 = vadd.f32 %v224, %v414
      %v416 = vpop.f32.mrf.mxu0
      %v417 = vadd.f32 %v224, %v416
      %418 = vmatmul.bf16.gmra.mxu0 %v298
      %v419 = vpop.f32.mrf.mxu0
      %v420 = vadd.f32 %v224, %v419
      %v421 = vpop.f32.mrf.mxu0
      %v422 = vadd.f32 %v224, %v421
      %423 = vmatmul.bf16.gmra.mxu0 %v299
      %v424 = vpop.f32.mrf.mxu0
      %v425 = vadd.f32 %v224, %v424
      %v426 = vpop.f32.mrf.mxu0
      %v427 = vadd.f32 %v224, %v426
      %428 = vmatmul.bf16.gmra.mxu0 %v300
      %v429 = vpop.f32.mrf.mxu0
      %v430 = vadd.f32 %v224, %v429
      %v431 = vpop.f32.mrf.mxu0
      %v432 = vadd.f32 %v224, %v431
      %433 = vmatmul.bf16.gmra.mxu0 %v301
      %v434 = vpop.f32.mrf.mxu0
      %v435 = vadd.f32 %v224, %v434
      %v436 = vpop.f32.mrf.mxu0
      %v437 = vadd.f32 %v224, %v436
      %438 = vmatmul.bf16.gmra.mxu0 %v302
      %v439 = vpop.f32.mrf.mxu0
      %v440 = vadd.f32 %v224, %v439
      %v441 = vpop.f32.mrf.mxu0
      %v442 = vadd.f32 %v224, %v441
      %443 = vmatmul.bf16.gmra.mxu0 %v303
      %v444 = vpop.f32.mrf.mxu0
      %v445 = vadd.f32 %v224, %v444
      %v446 = vpop.f32.mrf.mxu0
      %v447 = vadd.f32 %v224, %v446
      %448 = vmatmul.bf16.gmra.mxu0 %v304
      %v449 = vpop.f32.mrf.mxu0
      %v450 = vadd.f32 %v224, %v449
      %v451 = vpop.f32.mrf.mxu0
      %v452 = vadd.f32 %v224, %v451
      %453 = vmatmul.bf16.gmra.mxu0 %v305
      %v454 = vpop.f32.mrf.mxu0
      %v455 = vadd.f32 %v224, %v454
      %v456 = vpop.f32.mrf.mxu0
      %v457 = vadd.f32 %v224, %v456
      %458 = vdwg.mxu0
      %v459 = vmax.f32 %v380, 0.0
      %v460 = vmax.f32 %v382, 0.0
      %v461 = vmax.f32 %v385, 0.0
      %v462 = vmax.f32 %v387, 0.0
      %v463 = vmax.f32 %v390, 0.0
      %v464 = vmax.f32 %v392, 0.0
      %v465 = vmax.f32 %v395, 0.0
      %v466 = vmax.f32 %v397, 0.0
      %v467 = vmax.f32 %v400, 0.0
      %v468 = vmax.f32 %v402, 0.0
      %v469 = vmax.f32 %v405, 0.0
      %v470 = vmax.f32 %v407, 0.0
      %v471 = vmax.f32 %v410, 0.0
      %v472 = vmax.f32 %v412, 0.0
      %v473 = vmax.f32 %v415, 0.0
      %v474 = vmax.f32 %v417, 0.0
      %v475 = vmax.f32 %v420, 0.0
      %v476 = vmax.f32 %v422, 0.0
      %v477 = vmax.f32 %v425, 0.0
      %v478 = vmax.f32 %v427, 0.0
      %v479 = vmax.f32 %v430, 0.0
      %v480 = vmax.f32 %v432, 0.0
      %v481 = vmax.f32 %v435, 0.0
      %v482 = vmax.f32 %v437, 0.0
      %v483 = vmax.f32 %v440, 0.0
      %v484 = vmax.f32 %v442, 0.0
      %v485 = vmax.f32 %v445, 0.0
      %v486 = vmax.f32 %v447, 0.0
      %v487 = vmax.f32 %v450, 0.0
      %v488 = vmax.f32 %v452, 0.0
      %v489 = vmax.f32 %v455, 0.0
      %v490 = vmax.f32 %v457, 0.0
      %v491 = vmin.f32 %v459, 20.0
      %v492 = vmin.f32 %v460, 20.0
      %v493 = vmin.f32 %v461, 20.0
      %v494 = vmin.f32 %v462, 20.0
      %v495 = vmin.f32 %v463, 20.0
      %v496 = vmin.f32 %v464, 20.0
      %v497 = vmin.f32 %v465, 20.0
      %v498 = vmin.f32 %v466, 20.0
      %v499 = vmin.f32 %v467, 20.0
      %v500 = vmin.f32 %v468, 20.0
      %v501 = vmin.f32 %v469, 20.0
      %v502 = vmin.f32 %v470, 20.0
      %v503 = vmin.f32 %v471, 20.0
      %v504 = vmin.f32 %v472, 20.0
      %v505 = vmin.f32 %v473, 20.0
      %v506 = vmin.f32 %v474, 20.0
      %v507 = vmin.f32 %v475, 20.0
      %v508 = vmin.f32 %v476, 20.0
      %v509 = vmin.f32 %v477, 20.0
      %v510 = vmin.f32 %v478, 20.0
      %v511 = vmin.f32 %v479, 20.0
      %v512 = vmin.f32 %v480, 20.0
      %v513 = vmin.f32 %v481, 20.0
      %v514 = vmin.f32 %v482, 20.0
      %v515 = vmin.f32 %v483, 20.0
      %v516 = vmin.f32 %v484, 20.0
      %v517 = vmin.f32 %v485, 20.0
      %v518 = vmin.f32 %v486, 20.0
      %v519 = vmin.f32 %v487, 20.0
      %v520 = vmin.f32 %v488, 20.0
      %v521 = vmin.f32 %v489, 20.0
      %v522 = vmin.f32 %v490, 20.0
      %523 = vst [vmem:[%s172] sm:$0xff] %v491
      %524 = vst [vmem:[%s172 + $0x8] sm:$0xff] %v492
      %525 = vst [vmem:[%s172 + $0x10] sm:$0xff] %v493
      %526 = vst [vmem:[%s172 + $0x18] sm:$0xff] %v494
      %527 = vst [vmem:[%s172 + $0x20] sm:$0xff] %v495
      %528 = vst [vmem:[%s172 + $0x28] sm:$0xff] %v496
      %529 = vst [vmem:[%s172 + $0x30] sm:$0xff] %v497
      %530 = vst [vmem:[%s172 + $0x38] sm:$0xff] %v498
      %531 = vst [vmem:[%s172 + $0x40] sm:$0xff] %v499
      %532 = vst [vmem:[%s172 + $0x48] sm:$0xff] %v500
      %533 = vst [vmem:[%s172 + $0x50] sm:$0xff] %v501
      %534 = vst [vmem:[%s172 + $0x58] sm:$0xff] %v502
      %535 = vst [vmem:[%s172 + $0x60] sm:$0xff] %v503
      %536 = vst [vmem:[%s172 + $0x68] sm:$0xff] %v504
      %537 = vst [vmem:[%s172 + $0x70] sm:$0xff] %v505
      %538 = vst [vmem:[%s172 + $0x78] sm:$0xff] %v506
      %539 = vst [vmem:[%s172 + $0x80] sm:$0xff] %v507
      %540 = vst [vmem:[%s172 + $0x88] sm:$0xff] %v508
      %541 = vst [vmem:[%s172 + $0x90] sm:$0xff] %v509
      %542 = vst [vmem:[%s172 + $0x98] sm:$0xff] %v510
      %543 = vst [vmem:[%s172 + $0xa0] sm:$0xff] %v511
      %544 = vst [vmem:[%s172 + $0xa8] sm:$0xff] %v512
      %545 = vst [vmem:[%s172 + $0xb0] sm:$0xff] %v513
      %546 = vst [vmem:[%s172 + $0xb8] sm:$0xff] %v514
      %547 = vst [vmem:[%s172 + $0xc0] sm:$0xff] %v515
      %548 = vst [vmem:[%s172 + $0xc8] sm:$0xff] %v516
      %549 = vst [vmem:[%s172 + $0xd0] sm:$0xff] %v517
      %550 = vst [vmem:[%s172 + $0xd8] sm:$0xff] %v518
      %551 = vst [vmem:[%s172 + $0xe0] sm:$0xff] %v519
      %552 = vst [vmem:[%s172 + $0xe8] sm:$0xff] %v520
      %553 = vst [vmem:[%s172 + $0xf0] sm:$0xff] %v521
      %554 = vst [vmem:[%s172 + $0xf8] sm:$0xff] %v522
      %s555 = smul.u32 32, %s14
      %p556 = scmp.lt.s32.totalorder %s555, 63
      %s557 = scalar_select %p556, %s555, 63
      %s558 = smul.addr %s557, 8
      %s559 = scalar_lea.vmem %s3, %s558
      // Predicated region
      $region33: #{basic_conv2d_forward.1} parent=31 // pred_check
        %p560 = pneg %p100
      $region34: #{basic_conv2d_forward.1} parent=31 // pred_check_branch
        %562 = sbr.rel (%p560) target = $region36
      $region35: #{basic_conv2d_forward.1} parent=31 // pred_region
        %s563 = smul.u32 32, %s14
      $region36: #{basic_conv2d_forward.1} parent=31 // pred_fallthru
        _
    $region32: #{basic_conv2d_forward.1} parent=5 // pred_fallthru
      _
    %p564 = scmp.le.s32.totalorder 2, %s9
    // Predicated region
    $region37: #{basic_conv2d_forward.1} parent=5 // pred_check
      %p565 = pneg %p564
    $region38: #{basic_conv2d_forward.1} parent=5 // pred_check_branch
      %567 = sbr.rel (%p565) target = $region40
    $region39: #{basic_conv2d_forward.1} parent=5 // pred_region
      %s568 = ssub.s32 %s9, 2
      // Predicated region
      $region41: #{basic_conv2d_forward.1} parent=39 // pred_check
        %p569 = pneg %p106
      $region42: #{basic_conv2d_forward.1} parent=39 // pred_check_branch
        %571 = sbr.rel (%p569) target = $region44
      $region43: #{basic_conv2d_forward.1} parent=39 // pred_region
        %s572 = smul.u32 32, %s15
        %p573 = scmp.lt.s32.totalorder %s572, 63
        %s574 = scalar_select %p573, %s572, 63
        %s575 = smul.addr %s574, 8
        %s576 = scalar_lea.vmem %s3, %s575
      $region44: #{basic_conv2d_forward.1} parent=39 // pred_fallthru
        _
    $region40: #{basic_conv2d_forward.1} parent=5 // pred_fallthru
      _
  $region6: #{basic_conv2d_forward.1} parent=0 // loop_footer
    %s13 = sadd.s32 1, %s9
  $region7: #{basic_conv2d_forward.1} parent=0 // loop_footer_branch
    %8 = sbr.rel target = $region3
  $region8: #{basic_conv2d_forward.1} parent=0 // loop_exit
    _

</llo_original>
